<compile_context>
chip_gen: v7x
topology: tpu7x:2x2x1
jax: 0.10.0
libtpu: 0.0.40
codegen_flags: <defaults>
</compile_context>

<pallas_src>
import functools
import math

import jax
import jax.numpy as jnp
from jax import lax
from jax.experimental import pallas as pl
from jax.experimental.pallas import tpu as pltpu


_LANES = 128               # lane width: fully-packed vregs, unmasked loads/stores
_CHUNK_BYTES = 256 * 1024  # per-input working set per inner-loop iteration


def _target_block_bytes():
    """Per-input HBM->VMEM block size (the pipeline double-buffers it)."""
    try:
        kind = jax.devices()[0].device_kind.lower()
    except Exception:
        return 2 << 20
    # v6e / v7x: bigger blocks amortize per-step pipeline overhead; the 32 MiB
    # scoped default comfortably holds 2 inputs x 2 buffers x 4 MiB + temps.
    if ("v6" in kind) or ("v7" in kind) or ("7x" in kind):
        return 4 << 20
    return 2 << 20          # v5e (16 MiB scoped default) and anything unknown


def _masked_sq_sum_f32(p, t):
    """sum(((p * (t != 0)) - t)^2) in f32 — used for the tail / tiny fallback."""
    pf = p.astype(jnp.float32)
    tf = t.astype(jnp.float32)
    d = jnp.where(tf != 0.0, pf - tf, 0.0)
    return jnp.sum(d * d)


def _partial_kernel(pred_ref, target_ref, out_ref, *, chunk_rows, n_chunks, unroll):
    """Per-block partial sums of ((pred * (target != 0)) - target)^2.

    The (block_rows, 128) block is consumed `chunk_rows` rows at a time
    (bounded VMEM temporaries); each chunk is squared and folded into an
    (8, 128) f32 accumulator with plain vreg adds (major-axis reduction only,
    no cross-lane work per step).
    """
    lanes = pred_ref.shape[-1]

    def body(c, acc):
        start = pl.multiple_of(c * chunk_rows, chunk_rows)
        p = pred_ref[pl.ds(start, chunk_rows), :].astype(jnp.float32)
        t = target_ref[pl.ds(start, chunk_rows), :].astype(jnp.float32)
        d = jnp.where(t != 0.0, p - t, 0.0)            # 0 wherever target == 0
        dd = (d * d).reshape(chunk_rows // 8, 8, lanes)
        return acc + jnp.sum(dd, axis=0)

    acc0 = jnp.zeros((8, lanes), jnp.float32)
    out_ref[...] = lax.fori_loop(0, n_chunks, body, acc0, unroll=unroll)


def loss_seq2seq_mse(pred, target):
    """Masked MSE loss matching the PyTorch module's forward semantics."""
    assert pred.shape == target.shape
    n = pred.size
    out_dtype = jnp.result_type(pred.dtype, target.dtype)
    if n == 0:
        return jnp.array(jnp.nan, dtype=out_dtype)     # torch.mean of empty

    inv_n = jnp.float32(1.0 / float(n))                # reciprocal computed in f64

    p = pred.reshape(-1)
    t = target.reshape(-1)

    itemsize = min(pred.dtype.itemsize, target.dtype.itemsize)
    row_unit = max(8, 32 // itemsize)                  # native sublane packing
    rows = n // _LANES

    # Tiny or lane-ragged inputs: a single fused jnp reduction is correct and
    # cheaper than a kernel launch (and avoids any padding copy).
    if (n % _LANES != 0) or (rows < row_unit):
        return (_masked_sq_sum_f32(p, t) * inv_n).astype(out_dtype)

    # Free (bitcast) reshape to a lane-dense 2D layout — no HBM copy.
    p2 = p.reshape(rows, _LANES)
    t2 = t.reshape(rows, _LANES)

    row_bytes = _LANES * pred.dtype.itemsize
    br_full = max(row_unit,
                  (_target_block_bytes() // row_bytes) // row_unit * row_unit)
    if rows >= 2 * row_unit:
        # Guarantee >= 2 grid blocks so the "parallel" axis feeds both
        # TensorCores on v7x even for mid-size inputs.
        br = min(br_full, (rows // 2) // row_unit * row_unit)
    else:
        br = row_unit
    num_blocks = rows // br
    main_rows = num_blocks * br

    # Inner-loop chunking: bounded VMEM temporaries; chunk divides the block.
    cr_target = max(row_unit, (_CHUNK_BYTES // row_bytes) // row_unit * row_unit)
    cr = math.gcd(br, cr_target)
    n_chunks = br // cr
    unroll = True if n_chunks <= 8 else 2

    kernel = functools.partial(_partial_kernel, chunk_rows=cr,
                               n_chunks=n_chunks, unroll=unroll)

    partials = pl.pallas_call(
        kernel,
        out_shape=jax.ShapeDtypeStruct((num_blocks * 8, _LANES), jnp.float32),
        grid=(num_blocks,),
        in_specs=[
            pl.BlockSpec((br, _LANES), lambda i: (i, 0)),
            pl.BlockSpec((br, _LANES), lambda i: (i, 0)),
        ],
        out_specs=pl.BlockSpec((8, _LANES), lambda i: (i, 0)),
        compiler_params=pltpu.CompilerParams(
            dimension_semantics=("parallel",),         # shards blocks across TCs
        ),
    )(p2, t2)

    total = jnp.sum(partials)
    if main_rows < rows:
        # Ragged row tail (< one block): fused jnp reduction, no extra copy.
        total = total + _masked_sq_sum_f32(p2[main_rows:], t2[main_rows:])

    return (total * inv_n).astype(out_dtype)


if __name__ == "__main__":
    key = jax.random.PRNGKey(0)
    k_pred, k_tgt, k_mask = jax.random.split(key, 3)

    # Small seq2seq-ish shapes: batch=2, seq=24, hidden=96.  n = 4608 = 36*128,
    # which exercises the multi-block kernel path plus the ragged row tail.
    B, S, H = 2, 24, 96
    pred = jax.random.normal(k_pred, (B, S, H), dtype=jnp.float32)
    tgt_vals = jax.random.normal(k_tgt, (B, S, H), dtype=jnp.float32)
    keep = jax.random.bernoulli(k_mask, 0.5, (B, S, H))   # ~half the targets are 0
    target = jnp.where(keep, tgt_vals, 0.0).astype(jnp.float32)

    out = jax.block_until_ready(loss_seq2seq_mse(pred, target))

    # Pure-JAX reference of the same semantics.
    mask = (target != 0).astype(pred.dtype)
    ref = jnp.mean((pred * mask - target) ** 2)
    assert jnp.allclose(out, ref, rtol=1e-5, atol=1e-6), (out, ref)

    # Also check the tiny-input fallback path on the original (2, 8, 32) shape.
    pred_s, target_s = pred[:, :8, :32], target[:, :8, :32]
    out_s = jax.block_until_ready(loss_seq2seq_mse(pred_s, target_s))
    mask_s = (target_s != 0).astype(pred_s.dtype)
    ref_s = jnp.mean((pred_s * mask_s - target_s) ** 2)
    assert jnp.allclose(out_s, ref_s, rtol=1e-5, atol=1e-6), (out_s, ref_s)

    print("KERNEL_OK")
</pallas_src>

<mosaic_0001>
module attributes {stable_mosaic.version = 11 : i64} {
  func.func @_partial_kernel(%arg0: i32, %arg1: memref<16x128xf32, #tpu.memory_space<vmem>>, %arg2: memref<16x128xf32, #tpu.memory_space<vmem>>, %arg3: memref<8x128xf32, #tpu.memory_space<vmem>>) attributes {dimension_semantics = [#tpu.dimension_semantics<parallel>], iteration_bounds = array<i64: 2>, scalar_prefetch = 0 : i64, scratch_operands = 0 : i64, tpu.core_type = #tpu.core_type<tc>, window_params = [{transform_indices = @transform_0, window_bounds = array<i64: 16, 128>}, {transform_indices = @transform_1, window_bounds = array<i64: 16, 128>}, {transform_indices = @transform_2, window_bounds = array<i64: 8, 128>}]} {
    %cst = arith.constant 0.000000e+00 : f32
    %0 = vector.broadcast %cst : f32 to vector<8x128xf32>
    %c0_i32 = arith.constant 0 : i32
    %c16_i32 = arith.constant 16 : i32
    %1 = arith.muli %c0_i32, %c16_i32 : i32
    %2 = tpu.assume_multiple %1, 16 : i32
    %3 = arith.index_cast %2 : i32 to index
    %c0 = arith.constant 0 : index
    %4 = vector.load %arg1[%3, %c0] : memref<16x128xf32, #tpu.memory_space<vmem>>, vector<16x128xf32>
    %5 = arith.index_cast %2 : i32 to index
    %c0_0 = arith.constant 0 : index
    %6 = vector.load %arg2[%5, %c0_0] : memref<16x128xf32, #tpu.memory_space<vmem>>, vector<16x128xf32>
    %cst_1 = arith.constant 0.000000e+00 : f32
    %7 = vector.broadcast %cst_1 : f32 to vector<16x128xf32>
    %8 = arith.cmpf one, %6, %7 : vector<16x128xf32>
    %9 = arith.subf %4, %6 : vector<16x128xf32>
    %cst_2 = arith.constant 0.000000e+00 : f32
    %10 = vector.broadcast %cst_2 : f32 to vector<16x128xf32>
    %11 = arith.select %8, %9, %10 : vector<16x128xi1>, vector<16x128xf32>
    %12 = arith.mulf %11, %11 : vector<16x128xf32>
    %13 = vector.shape_cast %12 : vector<16x128xf32> to vector<2x8x128xf32>
    %cst_3 = arith.constant dense<0.000000e+00> : vector<8x128xf32>
    %14 = vector.multi_reduction <add>, %13, %cst_3 [0] : vector<2x8x128xf32> to vector<8x128xf32>
    %15 = arith.addf %0, %14 : vector<8x128xf32>
    %c1_i32 = arith.constant 1 : i32
    %c0_4 = arith.constant 0 : index
    %c0_5 = arith.constant 0 : index
    %16 = vector.load %arg3[%c0_4, %c0_5] : memref<8x128xf32, #tpu.memory_space<vmem>>, vector<8x128xf32>
    tpu.vector_store %arg3[%c0_4, %c0_5], %15 {strides = array<i32>} : memref<8x128xf32, #tpu.memory_space<vmem>>, vector<8x128xf32>,
    return
  }
  func.func @transform_0(%arg0: i32) -> (i32, i32) {
    %c0_i32 = arith.constant 0 : i32
    %c0_i32_0 = arith.constant 0 : i32
    return %arg0, %c0_i32 : i32, i32
  }
  func.func @transform_1(%arg0: i32) -> (i32, i32) {
    %c0_i32 = arith.constant 0 : i32
    %c0_i32_0 = arith.constant 0 : i32
    return %arg0, %c0_i32 : i32, i32
  }
  func.func @transform_2(%arg0: i32) -> (i32, i32) {
    %c0_i32 = arith.constant 0 : i32
    %c0_i32_0 = arith.constant 0 : i32
    return %arg0, %c0_i32 : i32, i32
  }
}

</mosaic_0001>

<llo_original>
// kernel: tpu_custom_call.1
$region0: #{tpu_custom_call.1}
  #allocation0 [shape = 'u32[]', space=smem, size = 0x4, offset = 0x4, fixed_abs, tag = 'smem constant byte address 0x4 - core index']
  #allocation1 [shape = 'u32[144,128]{1,0:T(1,128)}', space=vmem, size = 0x12000, scoped, tag = 'internal scratch']
  %s0 = inlined_call_operand.hbm [shape: f32[36,128], index: 0, kind: input, shape index: {}]
  %s1 = inlined_call_operand.hbm [shape: f32[36,128], index: 1, kind: input, shape index: {}]
  %s2 = inlined_call_operand.hbm [shape: f32[16,128], index: 2, kind: output, shape index: {}]
  %s3 = sld [smem:[#allocation0]]
  $region49: #{tpu_custom_call.1} parent=0
    _
  %s5 = ssub.s32 1, %s3
  %s6 = scalar_select 0, %s5, %s3
  $region1: #{tpu_custom_call.1} parent=0
    #allocation2 [shape = 'u8[16384]{0}', space=vmem, size = 0x4000, scoped, tag = 'input window, operand 0']
    #allocation3 [shape = 's32[2]{0}', space=sflag, size = 0x8, scoped, tag = 'scoped memory for tpu_custom_call.1']
    #allocation4 [shape = 's32[2]{0}', space=sflag, size = 0x8, scoped, tag = 'scoped memory for tpu_custom_call.1']
    #allocation5 [shape = 'u8[16384]{0}', space=vmem, size = 0x4000, scoped, tag = 'input window, operand 1']
    #allocation6 [shape = 's32[2]{0}', space=sflag, size = 0x8, scoped, tag = 'scoped memory for tpu_custom_call.1']
    #allocation7 [shape = 'u8[8192]{0}', space=vmem, size = 0x2000, scoped, tag = 'output window, operand 0']
    %7 = vsyncpa [#allocation3], 0
    %s8 = scalar_lea.sflag [#allocation3], 1
    %9 = vsyncpa %s8, 0
    %10 = vsyncpa [#allocation6], 0
    %s11 = scalar_lea.sflag [#allocation6], 1
    %12 = vsyncpa %s11, 0
    %13 = vsyncpa [#allocation4], 0
    %s14 = scalar_lea.sflag [#allocation4], 1
    %15 = vsyncpa %s14, 0
    loop: start=0, step=1, limit=4
    $region2: #{tpu_custom_call.1} parent=1 // loop_pre_header
      _
    $region3: #{tpu_custom_call.1} parent=1 // loop_header
      %s17 = sphi 0, %s21
      %p18 = scmp.ge.s32.totalorder %s17, 4
      %s27 = sphi 0, %s29
      %s30 = sphi 0, %s27
      %s31 = sphi 0, %s30
      %s47 = sphi 0, %s31
      %s53 = sphi 0, %s55
      %s56 = sphi 0, %s53
      %s57 = sphi 0, %s56
      %s73 = sphi 0, %s57
      %s79 = sphi 0, %s81
      %s82 = sphi 0, %s79
      %s83 = sphi 0, %s82
      %s99 = sphi 0, %s83
    $region4: #{tpu_custom_call.1} parent=1 // loop_header_branch
      %20 = sbr.rel (%p18) target = $region8
    $region5: #{tpu_custom_call.1} parent=1 // loop_body
      %s22 = ssub.s32 %s17, 1
      %s23 = ssub.s32 %s17, 2
      %s24 = sadd.s32 %s17, 1
      %s25 = ssub.s32 %s17, %s24
      %p26 = scmp.eq.s32.totalorder %s25, 0
      %s28 = sadd.s32 %s27, 1
      %s29 = scalar_select %p26, %s27, %s28
      %p32 = pneg %p26
      %p33 = scmp.eq.s32.totalorder %s17, 1
      %p34 = por %p32, %p33
      %p35 = scmp.ne.s32.totalorder %s27, %s30
      %p36 = scmp.eq.s32.totalorder %s17, 0
      %p37 = por %p35, %p36
      %p38 = scmp.ne.s32.totalorder %s27, %s30
      %p39 = scmp.eq.s32.totalorder %s22, 1
      %p40 = por %p38, %p39
      %p41 = scmp.ne.s32.totalorder %s30, %s31
      %p42 = scmp.eq.s32.totalorder %s22, 0
      %p43 = por %p41, %p42
      %p44 = scmp.ne.s32.totalorder %s30, %s31
      %p45 = scmp.eq.s32.totalorder %s23, 1
      %p46 = por %p44, %p45
      %p48 = scmp.ne.s32.totalorder %s31, %s47
      %p49 = scmp.eq.s32.totalorder %s23, 0
      %p50 = por %p48, %p49
      %s51 = ssub.s32 %s17, %s24
      %p52 = scmp.eq.s32.totalorder %s51, 0
      %s54 = sadd.s32 %s53, 1
      %s55 = scalar_select %p52, %s53, %s54
      %p58 = pneg %p52
      %p59 = scmp.eq.s32.totalorder %s17, 1
      %p60 = por %p58, %p59
      %p61 = scmp.ne.s32.totalorder %s53, %s56
      %p62 = scmp.eq.s32.totalorder %s17, 0
      %p63 = por %p61, %p62
      %p64 = scmp.ne.s32.totalorder %s53, %s56
      %p65 = scmp.eq.s32.totalorder %s22, 1
      %p66 = por %p64, %p65
      %p67 = scmp.ne.s32.totalorder %s56, %s57
      %p68 = scmp.eq.s32.totalorder %s22, 0
      %p69 = por %p67, %p68
      %p70 = scmp.ne.s32.totalorder %s56, %s57
      %p71 = scmp.eq.s32.totalorder %s23, 1
      %p72 = por %p70, %p71
      %p74 = scmp.ne.s32.totalorder %s57, %s73
      %p75 = scmp.eq.s32.totalorder %s23, 0
      %p76 = por %p74, %p75
      %s77 = ssub.s32 %s17, %s24
      %p78 = scmp.eq.s32.totalorder %s77, 0
      %s80 = sadd.s32 %s79, 1
      %s81 = scalar_select %p78, %s79, %s80
      %p84 = pneg %p78
      %p85 = scmp.eq.s32.totalorder %s17, 1
      %p86 = por %p84, %p85
      %p87 = scmp.ne.s32.totalorder %s79, %s82
      %p88 = scmp.eq.s32.totalorder %s17, 0
      %p89 = por %p87, %p88
      %p90 = scmp.ne.s32.totalorder %s79, %s82
      %p91 = scmp.eq.s32.totalorder %s22, 1
      %p92 = por %p90, %p91
      %p93 = scmp.ne.s32.totalorder %s82, %s83
      %p94 = scmp.eq.s32.totalorder %s22, 0
      %p95 = por %p93, %p94
      %p96 = scmp.ne.s32.totalorder %s82, %s83
      %p97 = scmp.eq.s32.totalorder %s23, 1
      %p98 = por %p96, %p97
      %p100 = scmp.ne.s32.totalorder %s83, %s99
      %p101 = scmp.eq.s32.totalorder %s23, 0
      %p102 = por %p100, %p101
      %p103 = scmp.le.s32.totalorder 1, %s17
      %p104 = scmp.lt.s32.totalorder %s17, 3
      %p105 = pnand %p103, %p104
      %p106 = pneg %p105
      // Predicated region
      $region9: #{tpu_custom_call.1} parent=5 // pred_check
        _
      $region10: #{tpu_custom_call.1} parent=5 // pred_check_branch
        %108 = sbr.rel (%p105) target = $region12
      $region11: #{tpu_custom_call.1} parent=5 // pred_region
        %s109 = ssub.s32 %s17, 1
      $region12: #{tpu_custom_call.1} parent=5 // pred_fallthru
        _
      %p110 = scmp.lt.s32.totalorder %s17, 2
      // Predicated region
      $region13: #{tpu_custom_call.1} parent=5 // pred_check
        %p111 = pneg %p110
      $region14: #{tpu_custom_call.1} parent=5 // pred_check_branch
        %113 = sbr.rel (%p111) target = $region16
      $region15: #{tpu_custom_call.1} parent=5 // pred_region
        // Predicated region
        $region17: #{tpu_custom_call.1} parent=15 // pred_check
          %p114 = pneg %p37
        $region18: #{tpu_custom_call.1} parent=15 // pred_check_branch
          %116 = sbr.rel (%p114) target = $region20
        $region19: #{tpu_custom_call.1} parent=15 // pred_region
          %s117 = sand.u32 %s27, 1
          %s118 = scalar_lea.sflag [#allocation3], %s117
          %s119 = sand.u32 %s27, 1
          %s120 = smul.addr %s119, 16
          %s121 = scalar_lea.vmem [#allocation2], %s120
          %s122 = smul.u32 2, %s17
          %s123 = ssub.s32 5, %s122
          %p124 = scmp.lt.s32.totalorder %s123, 2
          %s125 = scalar_select %p124, %s123, 2
          %s126 = smul.u32 128, %s125
          %s128 = ssub.s32 256, %s126
          %129 = vsyncadd %s118, %s128
          %p130 = scmp.ne.s32.totalorder 0, %s126
          %s131 = smul.addr %s122, 128
          %s132 = scalar_lea.hbm %s0, %s131
          %s133 = smul.u32 8, %s125
          %s134 = sshll.u32 %s121, 4
          %s135 = int_to_ptr.vmem [resolvable:$true] %s134
          %s136 = sshll.u32 %s133, 4
          %140 = dma.hbm_to_vmem [thread:$0]  (%p130), %s132, %s136, %s135, %s118, 128, 128, 8
        $region20: #{tpu_custom_call.1} parent=15 // pred_fallthru
          _
        // Predicated region
        $region21: #{tpu_custom_call.1} parent=15 // pred_check
          %p141 = pneg %p63
        $region22: #{tpu_custom_call.1} parent=15 // pred_check_branch
          %143 = sbr.rel (%p141) target = $region24
        $region23: #{tpu_custom_call.1} parent=15 // pred_region
          %s144 = sand.u32 %s53, 1
          %s145 = scalar_lea.sflag [#allocation6], %s144
          %s146 = sand.u32 %s53, 1
          %s147 = smul.addr %s146, 16
          %s148 = scalar_lea.vmem [#allocation5], %s147
          %s149 = smul.u32 2, %s17
          %s150 = ssub.s32 5, %s149
          %p151 = scmp.lt.s32.totalorder %s150, 2
          %s152 = scalar_select %p151, %s150, 2
          %s153 = smul.u32 128, %s152
          %s155 = ssub.s32 256, %s153
          %156 = vsyncadd %s145, %s155
          %p157 = scmp.ne.s32.totalorder 0, %s153
          %s158 = smul.addr %s149, 128
          %s159 = scalar_lea.hbm %s1, %s158
          %s160 = smul.u32 8, %s152
          %s161 = sshll.u32 %s148, 4
          %s162 = int_to_ptr.vmem [resolvable:$true] %s161
          %s163 = sshll.u32 %s160, 4
          %167 = dma.hbm_to_vmem [thread:$0]  (%p157), %s159, %s163, %s162, %s145, 128, 128, 8
        $region24: #{tpu_custom_call.1} parent=15 // pred_fallthru
          _
      $region16: #{tpu_custom_call.1} parent=5 // pred_fallthru
        _
      %p168 = scmp.le.s32.totalorder 1, %s17
      %p169 = scmp.lt.s32.totalorder %s17, 3
      %p170 = pnand %p168, %p169
      %p171 = pneg %p170
      // Predicated region
      $region25: #{tpu_custom_call.1} parent=5 // pred_check
        _
      $region26: #{tpu_custom_call.1} parent=5 // pred_check_branch
        %173 = sbr.rel (%p170) target = $region28
      $region27: #{tpu_custom_call.1} parent=5 // pred_region
        %s174 = ssub.s32 %s17, 1
        %s175 = sand.u32 %s30, 1
        %s176 = scalar_lea.sflag [#allocation3], %s175
        %s177 = sand.u32 %s30, 1
        %s178 = smul.addr %s177, 16
        %s179 = scalar_lea.vmem [#allocation2], %s178
        // Predicated region
        $region29: #{tpu_custom_call.1} parent=27 // pred_check
          %p180 = pneg %p43
        $region30: #{tpu_custom_call.1} parent=27 // pred_check_branch
          %182 = sbr.rel (%p180) target = $region32
        $region31: #{tpu_custom_call.1} parent=27 // pred_region
          %183 = dma.done %s176, 256
        $region32: #{tpu_custom_call.1} parent=27 // pred_fallthru
          _
        %s184 = sand.u32 %s56, 1
        %s185 = scalar_lea.sflag [#allocation6], %s184
        %s186 = sand.u32 %s56, 1
        %s187 = smul.addr %s186, 16
        %s188 = scalar_lea.vmem [#allocation5], %s187
        // Predicated region
        $region33: #{tpu_custom_call.1} parent=27 // pred_check
          %p189 = pneg %p69
        $region34: #{tpu_custom_call.1} parent=27 // pred_check_branch
          %191 = sbr.rel (%p189) target = $region36
        $region35: #{tpu_custom_call.1} parent=27 // pred_region
          %192 = dma.done %s185, 256
        $region36: #{tpu_custom_call.1} parent=27 // pred_fallthru
          _
        %s193 = sand.u32 %s30, 1
        %s194 = scalar_lea.sflag [#allocation3], %s193
        %s195 = sand.u32 %s30, 1
        %s196 = smul.addr %s195, 16
        %s197 = scalar_lea.vmem [#allocation2], %s196
        %p198 = pneg %p43
        %p199 = pneg %p40
        %s200 = sand.u32 %s56, 1
        %s201 = scalar_lea.sflag [#allocation6], %s200
        %s202 = sand.u32 %s56, 1
        %s203 = smul.addr %s202, 16
        %s204 = scalar_lea.vmem [#allocation5], %s203
        %p205 = pneg %p69
        %p206 = pneg %p66
        %p207 = pneg %p95
        %p208 = pneg %p92
        %s209 = sand.u32 %s82, 1
        %s210 = scalar_lea.sflag [#allocation4], %s209
        %s211 = sand.u32 %s82, 1
        %s212 = smul.addr %s211, 8
        %s213 = scalar_lea.vmem [#allocation7], %s212
        %s214 = smul.u32 2, %s22
        %s215 = ssub.s32 5, %s214
        %p216 = scmp.lt.s32.totalorder %s215, 2
        %s217 = scalar_select %p216, %s215, 2
        %s218 = smul.u32 128, %s217
        %s219 = smul.u32 2, %s22
        %s220 = ssub.s32 5, %s219
        %p221 = scmp.lt.s32.totalorder %s220, 2
        %s222 = scalar_select %p221, %s220, 2
        %s223 = smul.u32 128, %s222
        %v224 = vld [vmem:[%s179] sm:$0xff]
        %v225 = vld [vmem:[%s179 + $0x8] sm:$0xff]
        %v226 = vld [vmem:[%s188] sm:$0xff]
        %v227 = vld [vmem:[%s188 + $0x8] sm:$0xff]
        %vm228 = vcmp.ne.f32.partialorder %v226, 0.0
        %vm229 = vcmp.ne.f32.partialorder %v227, 0.0
        %v230 = vsub.f32 %v224, %v226
        %v231 = vsub.f32 %v225, %v227
        %v232 = vsel %vm228, %v230, 0.0
        %v233 = vsel %vm229, %v231, 0.0
        %v234 = vmul.f32 %v232, %v232
        %v235 = vmul.f32 %v233, %v233
        %v236 = vadd.f32 %v234, %v235
        %v237 = vadd.f32 %v236, 0.0
        %238 = vst [vmem:[%s213] sm:$0xff] %v237
        %s239 = sand.u32 %s82, 1
        %s240 = scalar_lea.sflag [#allocation4], %s239
        %s241 = sand.u32 %s82, 1
        %s242 = smul.addr %s241, 8
        %s243 = scalar_lea.vmem [#allocation7], %s242
        // Predicated region
        $region37: #{tpu_custom_call.1} parent=27 // pred_check
          %p244 = pneg %p92
        $region38: #{tpu_custom_call.1} parent=27 // pred_check_branch
          %246 = sbr.rel (%p244) target = $region40
        $region39: #{tpu_custom_call.1} parent=27 // pred_region
          %s248 = ssub.s32 128, 128
          %249 = vsyncadd %s240, %s248
          %s250 = smul.addr %s22, 128
          %s251 = scalar_lea.hbm %s2, %s250
          %s253 = sshll.u32 %s243, 4
          %s254 = int_to_ptr.vmem [resolvable:$true] %s253
          %256 = dma.vmem_to_hbm [thread:$0]  %s254, 128, %s251, %s240
        $region40: #{tpu_custom_call.1} parent=27 // pred_fallthru
          _
      $region28: #{tpu_custom_call.1} parent=5 // pred_fallthru
        _
      %p257 = scmp.le.s32.totalorder 2, %s17
      // Predicated region
      $region41: #{tpu_custom_call.1} parent=5 // pred_check
        %p258 = pneg %p257
      $region42: #{tpu_custom_call.1} parent=5 // pred_check_branch
        %260 = sbr.rel (%p258) target = $region44
      $region43: #{tpu_custom_call.1} parent=5 // pred_region
        %s261 = ssub.s32 %s17, 2
        // Predicated region
        $region45: #{tpu_custom_call.1} parent=43 // pred_check
          %p262 = pneg %p98
        $region46: #{tpu_custom_call.1} parent=43 // pred_check_branch
          %264 = sbr.rel (%p262) target = $region48
        $region47: #{tpu_custom_call.1} parent=43 // pred_region
          %s265 = sand.u32 %s83, 1
          %s266 = scalar_lea.sflag [#allocation4], %s265
          %s267 = sand.u32 %s83, 1
          %s268 = smul.addr %s267, 8
          %s269 = scalar_lea.vmem [#allocation7], %s268
          %270 = dma.done %s266, 128
        $region48: #{tpu_custom_call.1} parent=43 // pred_fallthru
          _
      $region44: #{tpu_custom_call.1} parent=5 // pred_fallthru
        _
    $region6: #{tpu_custom_call.1} parent=1 // loop_footer
      %s21 = sadd.s32 1, %s17
    $region7: #{tpu_custom_call.1} parent=1 // loop_footer_branch
      %16 = sbr.rel target = $region3
    $region8: #{tpu_custom_call.1} parent=1 // loop_exit
      _
    %271 = vsyncpa [#allocation3], 1
    %s272 = scalar_lea.sflag [#allocation3], 1
    %273 = vsyncpa %s272, 1
    %274 = vsyncpa [#allocation6], 1
    %s275 = scalar_lea.sflag [#allocation6], 1
    %276 = vsyncpa %s275, 1
    %277 = vsyncpa [#allocation4], 1
    %s278 = scalar_lea.sflag [#allocation4], 1
    %279 = vsyncpa %s278, 1

</llo_original>
